<compile_context>
chip_gen: v5e
topology: v5e:2x2
jax: 0.10.0
libtpu: 0.0.40
codegen_flags: <defaults>
</compile_context>

<pallas_src>
import jax
import jax.numpy as jnp
from jax.experimental import pallas as pl
from jax.experimental.pallas import tpu as pltpu

IN_F, H, OUT_F = 2, 64, 1


def mlp_pair_kernel(x_ref, w1_ref, b1_ref, w2_ref, b2_ref, w3_ref, b3_ref,
                    logits_ref, feat_ref):
    # Pair-packed layout: row r holds two batch items -> lanes 0..63 = batch 2r,
    # lanes 64..127 = batch 2r+1.  Shapes per tile:
    #   x_ref: (rows, 2*IN_F)          w1_ref: (2*IN_F, 2H)   b1_ref: (1, 2H)
    #   w2_ref: (2H, 2H) bf16          b2_ref: (1, 2H) f32
    #   w3_ref: (2H, 2*OUT_F) bf16     b3_ref: (1, 2*OUT_F) f32
    #   logits_ref: (rows, 2*OUT_F) f32   feat_ref: (rows, 2H)
    xw = x_ref[...]                                     # (rows, 4), compute dtype
    cdt = xw.dtype

    # Layer 1: Linear(2 -> 64).  K is tiny -> VPU broadcast FMAs against the
    # pair-block-diagonal weight rows (an MXU matmul would be ~97% padding).
    a1 = b1_ref[...]
    for j in range(xw.shape[1]):                        # static, 2*IN_F = 4 iterations
        a1 = a1 + xw[:, j:j + 1] * w1_ref[j:j + 1, :]
    # SiLU via tanh: x*sigmoid(x) == t*tanh(t) + t,  t = x/2  (single EUP op).
    t1 = 0.5 * a1
    h1 = t1 * jnp.tanh(t1) + t1                         # (rows, 128) cdt

    # Layer 2: Linear(64 -> 64) as a 128x128 block-diagonal MXU matmul,
    # f32 accumulation; bias added in f32 BEFORE any downcast.
    a2 = jnp.dot(h1.astype(jnp.bfloat16), w2_ref[...],
                 preferred_element_type=jnp.float32) + b2_ref[...]       # f32
    t2 = 0.5 * a2
    h2 = t2 * jnp.tanh(t2.astype(cdt)).astype(jnp.float32) + t2          # f32 SiLU
    feat_ref[...] = h2.astype(feat_ref.dtype)           # lane-dense (rows, 128) store

    # Layer 3: Linear(64 -> 1) per pair via the block-diagonal (128, 2) matmul.
    logits_ref[...] = jnp.dot(h2.astype(jnp.bfloat16), w3_ref[...],
                              preferred_element_type=jnp.float32) + b3_ref[...]


def _block_diag2(m):
    """[[m, 0], [0, m]] for the two batch items packed per lane-row."""
    z = jnp.zeros_like(m)
    top = jnp.concatenate([m, z], axis=1)
    bot = jnp.concatenate([z, m], axis=1)
    return jnp.concatenate([top, bot], axis=0)


def _device_config():
    try:
        kind = jax.devices()[0].device_kind.lower()
    except Exception:
        kind = ""
    legacy = any(t in kind for t in ("v2", "v3", "v4", "v5"))
    cdt = jnp.float32 if legacy else jnp.bfloat16        # v5e- lack bf16 VPU/EUP
    cap_pairs = 4096 if legacy else 8192                 # 8192 / 16384 batch rows per tile
    min_tiles = 4 if "7" in kind else 2                  # v7x: grid shards across 2 TCs
    vmem_limit = 48 * 1024 * 1024                        # also fits v7x's 64 MiB VMEM
    return cdt, cap_pairs, min_tiles, vmem_limit


def _pick_tiling(pairs, cap_pairs, min_tiles):
    """(num_tiles, pairs_per_tile): rows are a multiple of 8; pad past ceil(B/2)
    pairs is < 8*num_tiles (never a full dead tile); prefers an exact cover."""
    min_t = min_tiles if pairs >= 64 * min_tiles else 1
    nt0 = max(min_t, -(-pairs // cap_pairs))
    if pairs % 8 == 0:
        for nt in range(nt0, nt0 + 64):
            tp = pairs // nt
            if pairs % nt == 0 and tp % 8 == 0 and tp <= cap_pairs:
                return nt, tp
    tp = ((-(-pairs // nt0) + 7) // 8) * 8
    return nt0, tp


def model_wrapper_v2_forward(x, params, *, compute_dtype=None,
                             feat_dtype=jnp.float32, max_pairs_per_tile=None):
    """x: (B, ...) whose trailing dims flatten to IN_F features.
    params: PyTorch-convention (w: (out, in), b: (out,)) tuple.
    Returns (logits (B, OUT_F), feat (B, H)); feat_dtype=bfloat16 halves feat HBM
    writeback if the consumer can accept it."""
    cdt, cap_pairs, min_tiles, vmem_limit = _device_config()
    if compute_dtype is not None:
        cdt = jnp.dtype(compute_dtype)
    if max_pairs_per_tile is not None:
        cap_pairs = max(8, (int(max_pairs_per_tile) // 8) * 8)
    feat_dtype = jnp.dtype(feat_dtype)

    B = x.shape[0]
    x2d = x.reshape(B, -1)
    assert x2d.shape[1] == IN_F, f"expected {IN_F} features after flatten, got {x2d.shape[1]}"
    w1, b1, w2, b2, w3, b3 = params

    # Tiling: pad the batch only to the (pair, 8-row) granularity, never a full tile.
    pairs = -(-B // 2)
    num_tiles, tile_pairs = _pick_tiling(pairs, cap_pairs, min_tiles)
    P = num_tiles * tile_pairs
    PB = 2 * P                                           # padded batch rows

    xp = x2d.astype(cdt)
    if PB != B:
        xp = jnp.pad(xp, ((0, PB - B), (0, 0)))
    x_pairs = xp.reshape(P, 2 * IN_F)                    # free row-major reshape

    # Pair-block-diagonal weights (a few KB, VMEM-resident via constant index_maps).
    f32 = jnp.float32
    w1m = _block_diag2(jnp.asarray(w1, f32).T).astype(cdt)            # (2*IN_F, 2H)
    b1r = jnp.tile(jnp.asarray(b1, f32).reshape(1, H), (1, 2)).astype(cdt)
    w2m = _block_diag2(jnp.asarray(w2, f32).T).astype(jnp.bfloat16)   # (2H, 2H)
    b2r = jnp.tile(jnp.asarray(b2, f32).reshape(1, H), (1, 2))        # (1, 2H) f32
    w3m = _block_diag2(jnp.asarray(w3, f32).T).astype(jnp.bfloat16)   # (2H, 2*OUT_F)
    b3r = jnp.tile(jnp.asarray(b3, f32).reshape(1, OUT_F), (1, 2))    # (1, 2*OUT_F) f32

    resident = lambda shape: pl.BlockSpec(shape, lambda i: (0, 0))
    cost = pl.CostEstimate(
        flops=int(2 * PB * (IN_F * H + H * H + H * OUT_F)),
        transcendentals=int(2 * PB * H),
        bytes_accessed=int(PB * IN_F * jnp.dtype(cdt).itemsize
                           + PB * H * feat_dtype.itemsize
                           + PB * OUT_F * 4
                           + (w1m.size + w2m.size + w3m.size) * 2))

    logits_p, feat_p = pl.pallas_call(
        mlp_pair_kernel,
        out_shape=(jax.ShapeDtypeStruct((P, 2 * OUT_F), jnp.float32),
                   jax.ShapeDtypeStruct((P, 2 * H), feat_dtype)),
        grid=(num_tiles,),
        in_specs=[
            pl.BlockSpec((tile_pairs, 2 * IN_F), lambda i: (i, 0)),
            resident((2 * IN_F, 2 * H)), resident((1, 2 * H)),
            resident((2 * H, 2 * H)), resident((1, 2 * H)),
            resident((2 * H, 2 * OUT_F)), resident((1, 2 * OUT_F)),
        ],
        out_specs=(pl.BlockSpec((tile_pairs, 2 * OUT_F), lambda i: (i, 0)),
                   pl.BlockSpec((tile_pairs, 2 * H), lambda i: (i, 0))),
        compiler_params=pltpu.CompilerParams(
            dimension_semantics=("parallel",),
            vmem_limit_bytes=vmem_limit),
        cost_estimate=cost,
    )(x_pairs, w1m, b1r, w2m, b2r, w3m, b3r)

    # Free row-major reshapes back to batch-major; only the tiny pad rows are sliced off.
    logits = logits_p.reshape(PB, OUT_F)
    feat = feat_p.reshape(PB, H)
    if PB != B:
        logits = logits[:B]
        feat = feat[:B]
    return logits, feat


def init_params(key):
    """Deterministic init matching the PyTorch module's parameter shapes (out, in)."""
    k1, k2, k3, k4, k5, k6 = jax.random.split(key, 6)
    s1 = 1.0 / jnp.sqrt(IN_F)
    s2 = 1.0 / jnp.sqrt(H)
    w1 = jax.random.uniform(k1, (H, IN_F), jnp.float32, -s1, s1)
    b1 = jax.random.uniform(k2, (H,), jnp.float32, -s1, s1)
    w2 = jax.random.uniform(k3, (H, H), jnp.float32, -s2, s2)
    b2 = jax.random.uniform(k4, (H,), jnp.float32, -s2, s2)
    w3 = jax.random.uniform(k5, (OUT_F, H), jnp.float32, -s2, s2)
    b3 = jax.random.uniform(k6, (OUT_F,), jnp.float32, -s2, s2)
    return (w1, b1, w2, b2, w3, b3)


if __name__ == "__main__":
    key = jax.random.PRNGKey(0)
    pkey, xkey = jax.random.split(key)
    params = init_params(pkey)

    B = 8
    x = jax.random.normal(xkey, (B, 1, 2), jnp.float32)   # (B, 1, 2) -> flatten -> (B, 2)

    logits, feat = model_wrapper_v2_forward(x, params)
    jax.block_until_ready((logits, feat))

    # Pure-JAX reference (PyTorch (out, in) weight convention).
    w1, b1, w2, b2, w3, b3 = params
    silu = lambda v: v * jax.nn.sigmoid(v)

    def reference(xin):
        xf = xin.reshape(xin.shape[0], -1)
        f = silu(xf @ w1.T + b1)
        f = silu(f @ w2.T + b2)
        return f @ w3.T + b3, f

    ref_out, ref_feat = reference(x)

    cdt_used = _device_config()[0]
    tol = 2e-2 if jnp.dtype(cdt_used) == jnp.dtype(jnp.float32) else 7e-2
    assert logits.shape == (B, OUT_F) and feat.shape == (B, H)
    assert jnp.allclose(logits, ref_out, atol=tol, rtol=tol)
    assert jnp.allclose(feat, ref_feat, atol=tol, rtol=tol)

    # Also exercise the multi-tile + ragged-batch (padded/sliced) path.
    B2 = 300
    x2 = jax.random.normal(jax.random.fold_in(xkey, 1), (B2, IN_F), jnp.float32)
    logits2, feat2 = model_wrapper_v2_forward(x2, params, max_pairs_per_tile=64)
    jax.block_until_ready((logits2, feat2))
    ref_out2, ref_feat2 = reference(x2)
    assert logits2.shape == (B2, OUT_F) and feat2.shape == (B2, H)
    assert jnp.allclose(logits2, ref_out2, atol=tol, rtol=tol)
    assert jnp.allclose(feat2, ref_feat2, atol=tol, rtol=tol)

    print("KERNEL_OK")
</pallas_src>

<mosaic_0001>
module attributes {stable_mosaic.version = 11 : i64} {
  func.func @mlp_pair_kernel(%arg0: i32, %arg1: memref<8x4xbf16, #tpu.memory_space<vmem>>, %arg2: memref<4x128xbf16, #tpu.memory_space<vmem>>, %arg3: memref<1x128xbf16, #tpu.memory_space<vmem>>, %arg4: memref<128x128xbf16, #tpu.memory_space<vmem>>, %arg5: memref<1x128xf32, #tpu.memory_space<vmem>>, %arg6: memref<128x2xbf16, #tpu.memory_space<vmem>>, %arg7: memref<1x2xf32, #tpu.memory_space<vmem>>, %arg8: memref<8x2xf32, #tpu.memory_space<vmem>>, %arg9: memref<8x128xf32, #tpu.memory_space<vmem>>) attributes {dimension_semantics = [#tpu.dimension_semantics<parallel>], iteration_bounds = array<i64: 1>, scalar_prefetch = 0 : i64, scratch_operands = 0 : i64, tpu.core_type = #tpu.core_type<tc>, window_params = [{transform_indices = @transform_0, window_bounds = array<i64: 8, 4>}, {pipeline_mode = #tpu.pipeline_mode<synchronous>, transform_indices = @transform_1, window_bounds = array<i64: 4, 128>}, {pipeline_mode = #tpu.pipeline_mode<synchronous>, transform_indices = @transform_2, window_bounds = array<i64: 1, 128>}, {pipeline_mode = #tpu.pipeline_mode<synchronous>, transform_indices = @transform_3, window_bounds = array<i64: 128, 128>}, {pipeline_mode = #tpu.pipeline_mode<synchronous>, transform_indices = @transform_4, window_bounds = array<i64: 1, 128>}, {pipeline_mode = #tpu.pipeline_mode<synchronous>, transform_indices = @transform_5, window_bounds = array<i64: 128, 2>}, {pipeline_mode = #tpu.pipeline_mode<synchronous>, transform_indices = @transform_6, window_bounds = array<i64: 1, 2>}, {transform_indices = @transform_7, window_bounds = array<i64: 8, 2>}, {transform_indices = @transform_8, window_bounds = array<i64: 8, 128>}]} {
    %c0 = arith.constant 0 : index
    %c0_0 = arith.constant 0 : index
    %0 = vector.load %arg1[%c0, %c0_0] : memref<8x4xbf16, #tpu.memory_space<vmem>>, vector<8x4xbf16>
    %c0_1 = arith.constant 0 : index
    %c0_2 = arith.constant 0 : index
    %1 = vector.load %arg3[%c0_1, %c0_2] : memref<1x128xbf16, #tpu.memory_space<vmem>>, vector<1x128xbf16>
    %2 = vector.extract_strided_slice %0 {offsets = [0, 0], sizes = [8, 1], strides = [1, 1]} : vector<8x4xbf16> to vector<8x1xbf16>
    %c0_3 = arith.constant 0 : index
    %c0_4 = arith.constant 0 : index
    %3 = vector.load %arg2[%c0_3, %c0_4] : memref<4x128xbf16, #tpu.memory_space<vmem>>, vector<1x128xbf16>
    %4 = vector.broadcast %2 : vector<8x1xbf16> to vector<8x128xbf16>
    %5 = vector.broadcast %3 : vector<1x128xbf16> to vector<8x128xbf16>
    %6 = arith.mulf %4, %5 : vector<8x128xbf16>
    %7 = vector.broadcast %1 : vector<1x128xbf16> to vector<8x128xbf16>
    %8 = arith.addf %7, %6 : vector<8x128xbf16>
    %9 = vector.extract_strided_slice %0 {offsets = [0, 1], sizes = [8, 1], strides = [1, 1]} : vector<8x4xbf16> to vector<8x1xbf16>
    %c1 = arith.constant 1 : index
    %c0_5 = arith.constant 0 : index
    %10 = vector.load %arg2[%c1, %c0_5] : memref<4x128xbf16, #tpu.memory_space<vmem>>, vector<1x128xbf16>
    %11 = vector.broadcast %9 : vector<8x1xbf16> to vector<8x128xbf16>
    %12 = vector.broadcast %10 : vector<1x128xbf16> to vector<8x128xbf16>
    %13 = arith.mulf %11, %12 : vector<8x128xbf16>
    %14 = arith.addf %8, %13 : vector<8x128xbf16>
    %15 = vector.extract_strided_slice %0 {offsets = [0, 2], sizes = [8, 1], strides = [1, 1]} : vector<8x4xbf16> to vector<8x1xbf16>
    %c2 = arith.constant 2 : index
    %c0_6 = arith.constant 0 : index
    %16 = vector.load %arg2[%c2, %c0_6] : memref<4x128xbf16, #tpu.memory_space<vmem>>, vector<1x128xbf16>
    %17 = vector.broadcast %15 : vector<8x1xbf16> to vector<8x128xbf16>
    %18 = vector.broadcast %16 : vector<1x128xbf16> to vector<8x128xbf16>
    %19 = arith.mulf %17, %18 : vector<8x128xbf16>
    %20 = arith.addf %14, %19 : vector<8x128xbf16>
    %21 = vector.extract_strided_slice %0 {offsets = [0, 3], sizes = [8, 1], strides = [1, 1]} : vector<8x4xbf16> to vector<8x1xbf16>
    %c3 = arith.constant 3 : index
    %c0_7 = arith.constant 0 : index
    %22 = vector.load %arg2[%c3, %c0_7] : memref<4x128xbf16, #tpu.memory_space<vmem>>, vector<1x128xbf16>
    %23 = vector.broadcast %21 : vector<8x1xbf16> to vector<8x128xbf16>
    %24 = vector.broadcast %22 : vector<1x128xbf16> to vector<8x128xbf16>
    %25 = arith.mulf %23, %24 : vector<8x128xbf16>
    %26 = arith.addf %20, %25 : vector<8x128xbf16>
    %cst = arith.constant 5.000000e-01 : bf16
    %27 = vector.broadcast %cst : bf16 to vector<8x128xbf16>
    %28 = arith.mulf %27, %26 : vector<8x128xbf16>
    %29 = math.tanh %28 : vector<8x128xbf16>
    %30 = arith.mulf %28, %29 : vector<8x128xbf16>
    %31 = arith.addf %30, %28 : vector<8x128xbf16>
    %c0_8 = arith.constant 0 : index
    %c0_9 = arith.constant 0 : index
    %32 = vector.load %arg4[%c0_8, %c0_9] : memref<128x128xbf16, #tpu.memory_space<vmem>>, vector<128x128xbf16>
    %cst_10 = arith.constant dense<0.000000e+00> : vector<8x128xf32>
    %33 = tpu.matmul %31, %32, %cst_10 {dimension_numbers = #tpu.dot_dimension_numbers<[1], [0], [0], [1], [0, 0, 1, 1], [], []>} : vector<8x128xbf16>, vector<128x128xbf16>, vector<8x128xf32> -> vector<8x128xf32>
    %c0_11 = arith.constant 0 : index
    %c0_12 = arith.constant 0 : index
    %34 = vector.load %arg5[%c0_11, %c0_12] : memref<1x128xf32, #tpu.memory_space<vmem>>, vector<1x128xf32>
    %35 = vector.broadcast %34 : vector<1x128xf32> to vector<8x128xf32>
    %36 = arith.addf %33, %35 : vector<8x128xf32>
    %cst_13 = arith.constant 5.000000e-01 : f32
    %37 = vector.broadcast %cst_13 : f32 to vector<8x128xf32>
    %38 = arith.mulf %37, %36 : vector<8x128xf32>
    %39 = arith.truncf %38 : vector<8x128xf32> to vector<8x128xbf16>
    %40 = math.tanh %39 : vector<8x128xbf16>
    %41 = arith.extf %40 : vector<8x128xbf16> to vector<8x128xf32>
    %42 = arith.mulf %38, %41 : vector<8x128xf32>
    %43 = arith.addf %42, %38 : vector<8x128xf32>
    %c0_14 = arith.constant 0 : index
    %c0_15 = arith.constant 0 : index
    %44 = vector.load %arg9[%c0_14, %c0_15] : memref<8x128xf32, #tpu.memory_space<vmem>>, vector<8x128xf32>
    tpu.vector_store %arg9[%c0_14, %c0_15], %43 {strides = array<i32>} : memref<8x128xf32, #tpu.memory_space<vmem>>, vector<8x128xf32>,
    %45 = arith.truncf %43 : vector<8x128xf32> to vector<8x128xbf16>
    %c0_16 = arith.constant 0 : index
    %c0_17 = arith.constant 0 : index
    %46 = vector.load %arg6[%c0_16, %c0_17] : memref<128x2xbf16, #tpu.memory_space<vmem>>, vector<128x2xbf16>
    %cst_18 = arith.constant dense<0.000000e+00> : vector<8x2xf32>
    %47 = tpu.matmul %45, %46, %cst_18 {dimension_numbers = #tpu.dot_dimension_numbers<[1], [0], [0], [1], [0, 0, 1, 1], [], []>} : vector<8x128xbf16>, vector<128x2xbf16>, vector<8x2xf32> -> vector<8x2xf32>
    %c0_19 = arith.constant 0 : index
    %c0_20 = arith.constant 0 : index
    %48 = vector.load %arg7[%c0_19, %c0_20] : memref<1x2xf32, #tpu.memory_space<vmem>>, vector<1x2xf32>
    %49 = vector.broadcast %48 : vector<1x2xf32> to vector<8x2xf32>
    %50 = arith.addf %47, %49 : vector<8x2xf32>
    %c0_21 = arith.constant 0 : index
    %c0_22 = arith.constant 0 : index
    %51 = vector.load %arg8[%c0_21, %c0_22] : memref<8x2xf32, #tpu.memory_space<vmem>>, vector<8x2xf32>
    tpu.vector_store %arg8[%c0_21, %c0_22], %50 {strides = array<i32>} : memref<8x2xf32, #tpu.memory_space<vmem>>, vector<8x2xf32>,
    return
  }
  func.func @transform_0(%arg0: i32) -> (i32, i32) {
    %c0_i32 = arith.constant 0 : i32
    %c0_i32_0 = arith.constant 0 : i32
    return %arg0, %c0_i32 : i32, i32
  }
  func.func @transform_1(%arg0: i32) -> (i32, i32) {
    %c0_i32 = arith.constant 0 : i32
    %c0_i32_0 = arith.constant 0 : i32
    %c0_i32_1 = arith.constant 0 : i32
    return %c0_i32, %c0_i32_0 : i32, i32
  }
  func.func @transform_2(%arg0: i32) -> (i32, i32) {
    %c0_i32 = arith.constant 0 : i32
    %c0_i32_0 = arith.constant 0 : i32
    %c0_i32_1 = arith.constant 0 : i32
    return %c0_i32, %c0_i32_0 : i32, i32
  }
  func.func @transform_3(%arg0: i32) -> (i32, i32) {
    %c0_i32 = arith.constant 0 : i32
    %c0_i32_0 = arith.constant 0 : i32
    %c0_i32_1 = arith.constant 0 : i32
    return %c0_i32, %c0_i32_0 : i32, i32
  }
  func.func @transform_4(%arg0: i32) -> (i32, i32) {
    %c0_i32 = arith.constant 0 : i32
    %c0_i32_0 = arith.constant 0 : i32
    %c0_i32_1 = arith.constant 0 : i32
    return %c0_i32, %c0_i32_0 : i32, i32
  }
  func.func @transform_5(%arg0: i32) -> (i32, i32) {
    %c0_i32 = arith.constant 0 : i32
    %c0_i32_0 = arith.constant 0 : i32
    %c0_i32_1 = arith.constant 0 : i32
    return %c0_i32, %c0_i32_0 : i32, i32
  }
  func.func @transform_6(%arg0: i32) -> (i32, i32) {
    %c0_i32 = arith.constant 0 : i32
    %c0_i32_0 = arith.constant 0 : i32
    %c0_i32_1 = arith.constant 0 : i32
    return %c0_i32, %c0_i32_0 : i32, i32
  }
  func.func @transform_7(%arg0: i32) -> (i32, i32) {
    %c0_i32 = arith.constant 0 : i32
    %c0_i32_0 = arith.constant 0 : i32
    return %arg0, %c0_i32 : i32, i32
  }
  func.func @transform_8(%arg0: i32) -> (i32, i32) {
    %c0_i32 = arith.constant 0 : i32
    %c0_i32_0 = arith.constant 0 : i32
    return %arg0, %c0_i32 : i32, i32
  }
}

</mosaic_0001>

<llo_original>
// kernel: tpu_custom_call.1
$region0: #{tpu_custom_call.1}
  #allocation0 [shape = 'u32[]', space=smem, size = 0x4, offset = 0x4, fixed_abs, tag = 'smem constant byte address 0x4 - core index']
  #allocation1 [shape = 'u32[72,128]{1,0:T(1,128)}', space=vmem, size = 0x9000, scoped, tag = 'internal scratch']
  %s0 = inlined_call_operand.vmem [shape: bf16[8,4], index: 0, kind: input, shape index: {}]
  %s1 = inlined_call_operand.vmem [shape: bf16[4,128], index: 1, kind: input, shape index: {}]
  %s2 = inlined_call_operand.vmem [shape: bf16[1,128], index: 2, kind: input, shape index: {}]
  %s3 = inlined_call_operand.vmem [shape: bf16[128,128], index: 3, kind: input, shape index: {}]
  %s4 = inlined_call_operand.vmem [shape: f32[1,128], index: 4, kind: input, shape index: {}]
  %s5 = inlined_call_operand.vmem [shape: bf16[128,2], index: 5, kind: input, shape index: {}]
  %s6 = inlined_call_operand.vmem [shape: f32[1,2], index: 6, kind: input, shape index: {}]
  %s7 = inlined_call_operand.vmem [shape: f32[8,2], index: 7, kind: output, shape index: {0}]
  %s8 = inlined_call_operand.hbm [shape: f32[8,128], index: 8, kind: output, shape index: {1}]
  %9 = xla_tuple %s7, %s8
  %s10 = sld [smem:[#allocation0]]
  $region46: #{tpu_custom_call.1} parent=0
    _
  %s12 = ssub.s32 1, %s10
  %s13 = scalar_select 0, %s12, %s10
  $region1: #{tpu_custom_call.1} parent=0
    #allocation2 [shape = 'u8[4096]{0}', space=vmem, size = 0x1000, scoped, tag = 'output window, operand 1, single buffered']
    #allocation3 [shape = 's32[1]{0}', space=sflag, size = 0x4, scoped, tag = 'scoped memory for tpu_custom_call.1']
    %14 = vsyncpa [#allocation3], 0
    // Predicated region
    $region2: #{tpu_custom_call.1} parent=1 // pred_check
      _
    $region3: #{tpu_custom_call.1} parent=1 // pred_check_branch
      %16 = sbr.rel (0) target = $region5
    $region4: #{tpu_custom_call.1} parent=1 // pred_region
      _
    $region5: #{tpu_custom_call.1} parent=1 // pred_fallthru
      _
    // Predicated region
    $region6: #{tpu_custom_call.1} parent=1 // pred_check
      _
    $region7: #{tpu_custom_call.1} parent=1 // pred_check_branch
      %18 = sbr.rel (0) target = $region9
    $region8: #{tpu_custom_call.1} parent=1 // pred_region
      _
    $region9: #{tpu_custom_call.1} parent=1 // pred_fallthru
      _
    // Predicated region
    $region10: #{tpu_custom_call.1} parent=1 // pred_check
      _
    $region11: #{tpu_custom_call.1} parent=1 // pred_check_branch
      %20 = sbr.rel (0) target = $region13
    $region12: #{tpu_custom_call.1} parent=1 // pred_region
      _
    $region13: #{tpu_custom_call.1} parent=1 // pred_fallthru
      _
    // Predicated region
    $region14: #{tpu_custom_call.1} parent=1 // pred_check
      _
    $region15: #{tpu_custom_call.1} parent=1 // pred_check_branch
      %22 = sbr.rel (0) target = $region17
    $region16: #{tpu_custom_call.1} parent=1 // pred_region
      _
    $region17: #{tpu_custom_call.1} parent=1 // pred_fallthru
      _
    // Predicated region
    $region18: #{tpu_custom_call.1} parent=1 // pred_check
      _
    $region19: #{tpu_custom_call.1} parent=1 // pred_check_branch
      %24 = sbr.rel (0) target = $region21
    $region20: #{tpu_custom_call.1} parent=1 // pred_region
      _
    $region21: #{tpu_custom_call.1} parent=1 // pred_fallthru
      _
    // Predicated region
    $region22: #{tpu_custom_call.1} parent=1 // pred_check
      _
    $region23: #{tpu_custom_call.1} parent=1 // pred_check_branch
      %26 = sbr.rel (0) target = $region25
    $region24: #{tpu_custom_call.1} parent=1 // pred_region
      _
    $region25: #{tpu_custom_call.1} parent=1 // pred_fallthru
      _
    // Predicated region
    $region26: #{tpu_custom_call.1} parent=1 // pred_check
      _
    $region27: #{tpu_custom_call.1} parent=1 // pred_check_branch
      %28 = sbr.rel (0) target = $region29
    $region28: #{tpu_custom_call.1} parent=1 // pred_region
      _
    $region29: #{tpu_custom_call.1} parent=1 // pred_fallthru
      _
    %v29 = vld [vmem:[%s0] sm:$0xf]
    %v30 = vld [vmem:[%s2] sm:$0x1]
    %v31 = vld [vmem:[%s1] sm:$0x1]
    %33 = vset.pattern.permute.xlu0 0
    %34 = vperm.xlu0 %33, %v29
    %v35 = vpop.permute.xlu0 %34
    %v38 = vunpack.c.l.s4 839922192
    %v39 = vunpack.c.0.s8 %v38
    %v40 = vperm.slane %v35, %v39
    %v42 = vpack.i.b16 %v31, %v31
    %v44 = vperm.slane %v42, 0
    %v45 = vunpack.c.l.bf16 %v40
    %v46 = vunpack.c.l.bf16 %v44
    %v47 = vmul.f32 %v45, %v46
    %v48 = vpack.c.bf16 %v47, %v47
    %v50 = vpack.i.b16 %v30, %v30
    %v52 = vperm.slane %v50, 0
    %v53 = vunpack.c.l.bf16 %v52
    %v54 = vunpack.c.l.bf16 %v48
    %v55 = vadd.f32 %v53, %v54
    %v56 = vpack.c.bf16 %v55, %v55
    %57 = vset.pattern.permute.xlu0 1
    %58 = vperm.xlu0 %57, %v29
    %v59 = vpop.permute.xlu0 %58
    %v62 = vunpack.c.l.s4 839922192
    %v63 = vunpack.c.0.s8 %v62
    %v64 = vperm.slane %v59, %v63
    %v65 = vshrl.u32 %v31, 16
    %v66 = vpack.i.b16 %v65, %v65
    %v68 = vperm.slane %v66, 0
    %v69 = vunpack.c.l.bf16 %v64
    %v70 = vunpack.c.l.bf16 %v68
    %v71 = vmul.f32 %v69, %v70
    %v72 = vpack.c.bf16 %v71, %v71
    %v73 = vunpack.c.l.bf16 %v56
    %v74 = vunpack.c.l.bf16 %v72
    %v75 = vadd.f32 %v73, %v74
    %v76 = vpack.c.bf16 %v75, %v75
    %v77 = vld [vmem:[%s1] sm:$0x2]
    %78 = vset.pattern.permute.xlu0 2
    %79 = vperm.xlu0 %78, %v29
    %v80 = vpop.permute.xlu0 %79
    %v83 = vunpack.c.l.s4 839922192
    %v84 = vunpack.c.0.s8 %v83
    %v85 = vperm.slane %v80, %v84
    %v87 = vpack.i.b16 %v77, %v77
    %v89 = vperm.slane %v87, 1
    %v90 = vunpack.c.l.bf16 %v85
    %v91 = vunpack.c.l.bf16 %v89
    %v92 = vmul.f32 %v90, %v91
    %v93 = vpack.c.bf16 %v92, %v92
    %v94 = vunpack.c.l.bf16 %v76
    %v95 = vunpack.c.l.bf16 %v93
    %v96 = vadd.f32 %v94, %v95
    %v97 = vpack.c.bf16 %v96, %v96
    %98 = vset.pattern.permute.xlu0 3
    %99 = vperm.xlu0 %98, %v29
    %v100 = vpop.permute.xlu0 %99
    %v103 = vunpack.c.l.s4 839922192
    %v104 = vunpack.c.0.s8 %v103
    %v105 = vperm.slane %v100, %v104
    %v106 = vshrl.u32 %v77, 16
    %v107 = vpack.i.b16 %v106, %v106
    %v109 = vperm.slane %v107, 1
    %v110 = vunpack.c.l.bf16 %v105
    %v111 = vunpack.c.l.bf16 %v109
    %v112 = vmul.f32 %v110, %v111
    %v113 = vpack.c.bf16 %v112, %v112
    %v114 = vunpack.c.l.bf16 %v97
    %v115 = vunpack.c.l.bf16 %v113
    %v116 = vadd.f32 %v114, %v115
    %v117 = vpack.c.bf16 %v116, %v116
    %v118 = vunpack.c.l.bf16 %v117
    %v119 = vmul.f32 %v118, 0.5
    %v120 = vpack.c.bf16 %v119, %v119
    %v121 = vunpack.c.l.bf16 %v120
    %v122 = vtanh.pop %v121
    %v123 = vpack.c.bf16 %v122, %v122
    %v124 = vunpack.c.l.bf16 %v123
    %v125 = vmul.f32 %v121, %v124
    %v126 = vpack.c.bf16 %v125, %v125
    %v127 = vunpack.c.l.bf16 %v126
    %v128 = vadd.f32 %v127, %v121
    %v129 = vpack.c.bf16 %v128, %v128
    %v130 = vld [vmem:[%s3] sm:$0xf]
    %v131 = vld [vmem:[%s3 + $0x4] sm:$0xf]
    %v132 = vld [vmem:[%s3 + $0x8] sm:$0xf]
    %v133 = vld [vmem:[%s3 + $0xc] sm:$0xf]
    %v134 = vld [vmem:[%s3 + $0x10] sm:$0xf]
    %v135 = vld [vmem:[%s3 + $0x14] sm:$0xf]
    %v136 = vld [vmem:[%s3 + $0x18] sm:$0xf]
    %v137 = vld [vmem:[%s3 + $0x1c] sm:$0xf]
    %v138 = vld [vmem:[%s3 + $0x20] sm:$0xf]
    %v139 = vld [vmem:[%s3 + $0x24] sm:$0xf]
    %v140 = vld [vmem:[%s3 + $0x28] sm:$0xf]
    %v141 = vld [vmem:[%s3 + $0x2c] sm:$0xf]
    %v142 = vld [vmem:[%s3 + $0x30] sm:$0xf]
    %v143 = vld [vmem:[%s3 + $0x34] sm:$0xf]
    %v144 = vld [vmem:[%s3 + $0x38] sm:$0xf]
    %v145 = vld [vmem:[%s3 + $0x3c] sm:$0xf]
    %v146 = vld [vmem:[%s4] sm:$0x1]
    %v148 = vperm.slane %v146, 0
    %v166 = vunpack.c.l.b16 %v130
    %v167 = vunpack.c.l.b16 %v131
    %v168 = vunpack.c.l.b16 %v132
    %v169 = vunpack.c.l.b16 %v133
    %v170 = vunpack.c.l.b16 %v134
    %v171 = vunpack.c.l.b16 %v135
    %v172 = vunpack.c.l.b16 %v136
    %v173 = vunpack.c.l.b16 %v137
    %v174 = vunpack.c.l.b16 %v138
    %v175 = vunpack.c.l.b16 %v139
    %v176 = vunpack.c.l.b16 %v140
    %v177 = vunpack.c.l.b16 %v141
    %v178 = vunpack.c.l.b16 %v142
    %v179 = vunpack.c.l.b16 %v143
    %v180 = vunpack.c.l.b16 %v144
    %v181 = vunpack.c.l.b16 %v145
    %v182 = vpack.c.b16 %v167, %v166
    %v183 = vpack.c.b16 %v169, %v168
    %v184 = vpack.c.b16 %v171, %v170
    %v185 = vpack.c.b16 %v173, %v172
    %v186 = vpack.c.b16 %v175, %v174
    %v187 = vpack.c.b16 %v177, %v176
    %v188 = vpack.c.b16 %v179, %v178
    %v189 = vpack.c.b16 %v181, %v180
    %198 = vmatpush.bf16.msra.mxu0 %v189
    %199 = vmatpush.bf16.msra.mxu0 %v188
    %200 = vmatpush.bf16.msra.mxu0 %v187
    %201 = vmatpush.bf16.msra.mxu0 %v186
    %202 = vmatpush.bf16.msra.mxu0 %v185
    %203 = vmatpush.bf16.msra.mxu0 %v184
    %204 = vmatpush.bf16.msra.mxu0 %v183
    %205 = vmatpush.bf16.msra.mxu0 %v182
    %206 = vmatmul.bf16.gmra.mxu0 %v129
    %v207 = vpop.f32.mrf.mxu0
    %v208 = vadd.f32 %v148, %v207
    %v209 = vpop.f32.mrf.mxu0
    %210 = vdwg.mxu0
    %v211 = vmul.f32 %v208, 0.5
    %v212 = vpack.c.bf16 %v211, %v211
    %v213 = vunpack.c.l.bf16 %v212
    %v214 = vtanh.pop %v213
    %v215 = vpack.c.bf16 %v214, %v214
    %v216 = vunpack.c.l.bf16 %v215
    %v217 = vmul.f32 %v211, %v216
    %v218 = vadd.f32 %v217, %v211
    %219 = vst [vmem:[#allocation2] sm:$0xff] %v218
    %v220 = vpack.c.bf16 %v218, %v218
    %v221 = vld [vmem:[%s5] sm:$0xf]
    %v222 = vld [vmem:[%s5 + $0x4] sm:$0xf]
    %v223 = vld [vmem:[%s5 + $0x8] sm:$0xf]
    %v224 = vld [vmem:[%s5 + $0xc] sm:$0xf]
    %v225 = vld [vmem:[%s5 + $0x10] sm:$0xf]
    %v226 = vld [vmem:[%s5 + $0x14] sm:$0xf]
    %v227 = vld [vmem:[%s5 + $0x18] sm:$0xf]
    %v228 = vld [vmem:[%s5 + $0x1c] sm:$0xf]
    %v229 = vld [vmem:[%s5 + $0x20] sm:$0xf]
    %v230 = vld [vmem:[%s5 + $0x24] sm:$0xf]
    %v231 = vld [vmem:[%s5 + $0x28] sm:$0xf]
    %v232 = vld [vmem:[%s5 + $0x2c] sm:$0xf]
    %v233 = vld [vmem:[%s5 + $0x30] sm:$0xf]
    %v234 = vld [vmem:[%s5 + $0x34] sm:$0xf]
    %v235 = vld [vmem:[%s5 + $0x38] sm:$0xf]
    %v236 = vld [vmem:[%s5 + $0x3c] sm:$0xf]
    %v237 = vld [vmem:[%s6] sm:$0x1]
    %v239 = vperm.slane %v237, 0
    %v257 = vunpack.c.l.b16 %v221
    %v258 = vunpack.c.l.b16 %v222
    %v259 = vunpack.c.l.b16 %v223
    %v260 = vunpack.c.l.b16 %v224
    %v261 = vunpack.c.l.b16 %v225
    %v262 = vunpack.c.l.b16 %v226
    %v263 = vunpack.c.l.b16 %v227
    %v264 = vunpack.c.l.b16 %v228
    %v265 = vunpack.c.l.b16 %v229
    %v266 = vunpack.c.l.b16 %v230
    %v267 = vunpack.c.l.b16 %v231
    %v268 = vunpack.c.l.b16 %v232
    %v269 = vunpack.c.l.b16 %v233
    %v270 = vunpack.c.l.b16 %v234
    %v271 = vunpack.c.l.b16 %v235
    %v272 = vunpack.c.l.b16 %v236
    %v273 = vpack.c.b16 %v258, %v257
    %v274 = vpack.c.b16 %v260, %v259
    %v275 = vpack.c.b16 %v262, %v261
    %v276 = vpack.c.b16 %v264, %v263
    %v277 = vpack.c.b16 %v266, %v265
    %v278 = vpack.c.b16 %v268, %v267
    %v279 = vpack.c.b16 %v270, %v269
    %v280 = vpack.c.b16 %v272, %v271
    %289 = vmatpush.bf16.msra.mxu0 %v280
    %290 = vmatpush.bf16.msra.mxu0 %v279
    %291 = vmatpush.bf16.msra.mxu0 %v278
    %292 = vmatpush.bf16.msra.mxu0 %v277
    %293 = vmatpush.bf16.msra.mxu0 %v276
    %294 = vmatpush.bf16.msra.mxu0 %v275
    %295 = vmatpush.bf16.msra.mxu0 %v274
    %296 = vmatpush.bf16.msra.mxu0 %v273
    %297 = vmatmul.bf16.gmra.mxu0 %v220
    %v298 = vpop.f32.mrf.mxu0
    %v299 = vadd.f32 %v239, %v298
    %v300 = vpop.f32.mrf.mxu0
    %301 = vdwg.mxu0
    %vm302 = vcmask 15360
    %303 = vst.msk [vmem:[%s7] sm:$0xff] %vm302, %v299
    // Predicated region
    $region30: #{tpu_custom_call.1} parent=1 // pred_check
      _
    $region31: #{tpu_custom_call.1} parent=1 // pred_check_branch
      %305 = sbr.rel (0) target = $region33
    $region32: #{tpu_custom_call.1} parent=1 // pred_region
      _
    $region33: #{tpu_custom_call.1} parent=1 // pred_fallthru
      _
    // Predicated region
    $region34: #{tpu_custom_call.1} parent=1 // pred_check
      _
    $region35: #{tpu_custom_call.1} parent=1 // pred_check_branch
      %307 = sbr.rel (0) target = $region37
    $region36: #{tpu_custom_call.1} parent=1 // pred_region
      %309 = vsyncadd [#allocation3], 0
      %s311 = sshll.u32 [#allocation2], 4
      %s312 = int_to_ptr.vmem [resolvable:$true] %s311
      %s313 = sshll.u32 %s8, 4
      %s314 = int_to_ptr.hbm [resolvable:$true] %s313
      %316 = dma.vmem_to_hbm [thread:$0]  %s312, 128, %s314, [#allocation3]
    $region37: #{tpu_custom_call.1} parent=1 // pred_fallthru
      _
    // Predicated region
    $region38: #{tpu_custom_call.1} parent=1 // pred_check
      _
    $region39: #{tpu_custom_call.1} parent=1 // pred_check_branch
      %318 = sbr.rel (0) target = $region41
    $region40: #{tpu_custom_call.1} parent=1 // pred_region
      _
    $region41: #{tpu_custom_call.1} parent=1 // pred_fallthru
      _
    // Predicated region
    $region42: #{tpu_custom_call.1} parent=1 // pred_check
      _
    $region43: #{tpu_custom_call.1} parent=1 // pred_check_branch
      %320 = sbr.rel (0) target = $region45
    $region44: #{tpu_custom_call.1} parent=1 // pred_region
      %322 = dma.done [#allocation3], 128
    $region45: #{tpu_custom_call.1} parent=1 // pred_fallthru
      _
    %323 = vsyncpa [#allocation3], 1

</llo_original>
